<compile_context>
chip_gen: v7x
topology: tpu7x:2x2x1
jax: 0.10.0
libtpu: 0.0.40
codegen_flags: <defaults>
</compile_context>

<pallas_src>
import functools

import jax
import jax.numpy as jnp
from jax.experimental import pallas as pl
from jax.experimental.pallas import tpu as pltpu


def _round_up(x, m):
    return (x + m - 1) // m * m


def _bootstrap_loss_kernel(logits_ref, side_ref, out_ref, *, n_rows):
    i = pl.program_id(0)

    # Zero the resident scalar accumulator on the first grid step.
    @pl.when(i == 0)
    def _():
        out_ref[...] = jnp.zeros_like(out_ref)

    # Load native dtype (possibly bf16) and upcast in-register.
    logits = logits_ref[...].astype(jnp.float32)          # (TILE_N, C)
    side = side_ref[...]                                  # (TILE_N, 3) f32
    bconf = side[:, 0:1]                                  # beta * normalized noise conf
    zconf = side[:, 1:2]                                  # (1-beta) * normalized (1 - noise conf)
    labels = side[:, 2:3].astype(jnp.int32)               # class index (exact for C < 2**24)

    tn, c = logits.shape

    # Row-wise stable log-sum-exp.
    row_max = jnp.max(logits, axis=1, keepdims=True)                      # (TILE_N, 1)
    lse = row_max + jnp.log(jnp.sum(jnp.exp(logits - row_max),
                                    axis=1, keepdims=True))               # (TILE_N, 1)

    # Gather the target-class logit via compare + masked max (no dynamic
    # gather on TPU; cheaper than one-hot cast->mul->sum).
    cols = jax.lax.broadcasted_iota(jnp.int32, (tn, c), 1)
    logit_y = jnp.max(jnp.where(cols == labels, logits, jnp.float32(-jnp.inf)),
                      axis=1, keepdims=True)                              # (TILE_N, 1)

    # Per-row contribution:
    #   bconf * (lse - logit_y)  -  zconf * (row_max - lse)
    # = (bconf + zconf) * lse - bconf * logit_y - zconf * row_max
    contrib = (bconf + zconf) * lse - bconf * logit_y - zconf * row_max   # (TILE_N, 1)

    # Mask the ragged tail (rows past N read out-of-bounds garbage).
    rows = i * tn + jax.lax.broadcasted_iota(jnp.int32, (tn, 1), 0)
    contrib = jnp.where(rows < n_rows, contrib, jnp.float32(0.0))

    out_ref[...] += jnp.sum(contrib)


def hard_bootstrapping_loss(y_pred, y, ind, record, beta=0.8, reduce=False,
                            tile_n=None):
    """JAX/Pallas equivalent of HardBootstrappingLoss.forward."""
    n, c = y_pred.shape
    itemsize = jnp.dtype(y_pred.dtype).itemsize

    # ---- plain-JAX glue: per-sample confidence weights (O(N), tiny) -------
    noise_conf = jnp.mean(record[ind].astype(jnp.float32), axis=1)         # (N,)
    beta_conf = noise_conf / jnp.sum(noise_conf) * beta                    # (N,)
    boot_conf = (1.0 - noise_conf) / jnp.sum(1.0 - noise_conf) * (1.0 - beta)

    # Pack weights + label into a single f32 side stream (one DMA per tile).
    side = jnp.stack(
        [beta_conf, boot_conf, y.astype(jnp.float32)], axis=1
    ).astype(jnp.float32)                                                  # (N, 3)

    # ---- tile sizing -------------------------------------------------------
    if tile_n is None:
        max_tile_bytes = 12 * 2**20  # per input buffer; x2 double-buffered ~24 MiB
        cap = max(8, (max_tile_bytes // max(1, c * itemsize)) // 8 * 8)
        tile_n = int(min(1024, cap, _round_up(n, 8)))
    grid = pl.cdiv(n, tile_n)

    vmem_limit = int(min(
        100 * 2**20,
        max(32 * 2**20, 2 * tile_n * (c * itemsize + 3 * 4) + 4 * 2**20)))

    cost = pl.CostEstimate(
        flops=6 * n * c,
        transcendentals=n * c,
        bytes_accessed=n * c * itemsize + n * 3 * 4 + 4)

    # ---- Pallas kernel: one pass over the logits, scalar accumulator ------
    out = pl.pallas_call(
        functools.partial(_bootstrap_loss_kernel, n_rows=n),
        out_shape=jax.ShapeDtypeStruct((1, 1), jnp.float32),
        grid=(grid,),
        in_specs=[
            pl.BlockSpec((tile_n, c), lambda i: (i, 0)),
            pl.BlockSpec((tile_n, 3), lambda i: (i, 0)),
        ],
        out_specs=pl.BlockSpec((1, 1), lambda i: (0, 0)),
        compiler_params=pltpu.CompilerParams(
            dimension_semantics=("arbitrary",),
            vmem_limit_bytes=vmem_limit),
        cost_estimate=cost,
    )(y_pred, side)

    loss = out[0, 0]
    if reduce:
        # torch.mean of a 0-d tensor is the tensor itself.
        return loss
    return loss


def _reference_loss(y_pred, y, ind, record, beta=0.8):
    """Pure-JAX reference for correctness check."""
    noise_conf = jnp.mean(record[ind], axis=1)
    beta_conf = noise_conf / jnp.sum(noise_conf) * beta
    boot_conf = (1.0 - noise_conf) / jnp.sum(1.0 - noise_conf) * (1.0 - beta)
    logp = jax.nn.log_softmax(y_pred, axis=1)
    ce = -jnp.take_along_axis(logp, y[:, None], axis=1)[:, 0]
    z = jnp.argmax(y_pred, axis=1)
    boot = jnp.take_along_axis(logp, z[:, None], axis=1)[:, 0]
    return jnp.sum(ce * beta_conf) - jnp.sum(boot * boot_conf)


if __name__ == "__main__":
    key = jax.random.PRNGKey(0)
    k1, k2, k3, k4 = jax.random.split(key, 4)

    N, C = 40, 32          # batch, num classes
    M, R = 64, 5           # dataset size, record history length

    y_pred = jax.random.normal(k1, (N, C), dtype=jnp.float32)
    y = jax.random.randint(k2, (N,), 0, C, dtype=jnp.int32)
    ind = jax.random.randint(k3, (N,), 0, M, dtype=jnp.int32)
    record = jax.random.uniform(k4, (M, R), dtype=jnp.float32,
                                minval=0.1, maxval=0.9)

    # f32 input; tile_n=16 forces a 3-step grid with a masked ragged tail.
    loss = hard_bootstrapping_loss(y_pred, y, ind, record, beta=0.8,
                                   reduce=False, tile_n=16)
    loss = jax.block_until_ready(loss)
    ref = _reference_loss(y_pred, y, ind, record, beta=0.8)
    assert jnp.allclose(loss, ref, rtol=1e-5, atol=1e-5), (loss, ref)

    # bf16 input: kernel DMAs native bf16 and upcasts in-register.
    yb = y_pred.astype(jnp.bfloat16)
    loss_bf16 = hard_bootstrapping_loss(yb, y, ind, record, beta=0.8,
                                        reduce=False, tile_n=16)
    loss_bf16 = jax.block_until_ready(loss_bf16)
    ref_bf16 = _reference_loss(yb.astype(jnp.float32), y, ind, record, beta=0.8)
    assert jnp.allclose(loss_bf16, ref_bf16, rtol=1e-4, atol=1e-4), (loss_bf16, ref_bf16)

    print("KERNEL_OK")
</pallas_src>

<mosaic_0001>
module attributes {stable_mosaic.version = 11 : i64} {
  func.func @_bootstrap_loss_kernel(%arg0: i32, %arg1: memref<16x32xf32, #tpu.memory_space<vmem>>, %arg2: memref<16x3xf32, #tpu.memory_space<vmem>>, %arg3: memref<1x1xf32, #tpu.memory_space<vmem>>) attributes {dimension_semantics = [#tpu.dimension_semantics<arbitrary>], iteration_bounds = array<i64: 3>, scalar_prefetch = 0 : i64, scratch_operands = 0 : i64, tpu.core_type = #tpu.core_type<tc>, window_params = [{transform_indices = @transform_0, window_bounds = array<i64: 16, 32>}, {transform_indices = @transform_1, window_bounds = array<i64: 16, 3>}, {pipeline_mode = #tpu.pipeline_mode<synchronous>, transform_indices = @transform_2, window_bounds = array<i64: 1, 1>}]} {
    %c0_i32 = arith.constant 0 : i32
    %0 = arith.cmpi eq, %arg0, %c0_i32 : i32
    %1 = arith.extui %0 : i1 to i32
    %c0_i32_0 = arith.constant 0 : i32
    %2 = arith.cmpi ne, %1, %c0_i32_0 : i32
    scf.if %2 {
      %cst_13 = arith.constant 0.000000e+00 : f32
      %47 = vector.broadcast %cst_13 : f32 to vector<1x1xf32>
      %c0_14 = arith.constant 0 : index
      %c0_15 = arith.constant 0 : index
      %48 = vector.load %arg3[%c0_14, %c0_15] : memref<1x1xf32, #tpu.memory_space<vmem>>, vector<1x1xf32>
      tpu.vector_store %arg3[%c0_14, %c0_15], %47 {strides = array<i32>} : memref<1x1xf32, #tpu.memory_space<vmem>>, vector<1x1xf32>,
    } else {
    }
    %c0 = arith.constant 0 : index
    %c0_1 = arith.constant 0 : index
    %3 = vector.load %arg1[%c0, %c0_1] : memref<16x32xf32, #tpu.memory_space<vmem>>, vector<16x32xf32>
    %c0_2 = arith.constant 0 : index
    %c0_3 = arith.constant 0 : index
    %4 = vector.load %arg2[%c0_2, %c0_3] : memref<16x3xf32, #tpu.memory_space<vmem>>, vector<16x3xf32>
    %5 = vector.extract_strided_slice %4 {offsets = [0, 0], sizes = [16, 1], strides = [1, 1]} : vector<16x3xf32> to vector<16x1xf32>
    %6 = vector.extract_strided_slice %4 {offsets = [0, 1], sizes = [16, 1], strides = [1, 1]} : vector<16x3xf32> to vector<16x1xf32>
    %7 = vector.extract_strided_slice %4 {offsets = [0, 2], sizes = [16, 1], strides = [1, 1]} : vector<16x3xf32> to vector<16x1xf32>
    %8 = arith.fptosi %7 : vector<16x1xf32> to vector<16x1xi32>
    %cst = arith.constant dense<0xFF800000> : vector<16xf32>
    %9 = vector.multi_reduction <maximumf>, %3, %cst [1] : vector<16x32xf32> to vector<16xf32>
    %10 = vector.shape_cast %9 : vector<16xf32> to vector<16x1xf32>
    %11 = vector.broadcast %10 : vector<16x1xf32> to vector<16x32xf32>
    %12 = arith.subf %3, %11 : vector<16x32xf32>
    %13 = math.exp %12 : vector<16x32xf32>
    %cst_4 = arith.constant dense<0.000000e+00> : vector<16xf32>
    %14 = vector.multi_reduction <add>, %13, %cst_4 [1] : vector<16x32xf32> to vector<16xf32>
    %15 = vector.shape_cast %14 : vector<16xf32> to vector<16x1xf32>
    %16 = math.log %15 : vector<16x1xf32>
    %17 = arith.addf %10, %16 : vector<16x1xf32>
    %18 = tpu.iota {dimensions = array<i32: 1>} : vector<16x32xi32>
    %19 = vector.broadcast %8 : vector<16x1xi32> to vector<16x32xi32>
    %20 = arith.cmpi eq, %18, %19 : vector<16x32xi32>
    %cst_5 = arith.constant 0xFF800000 : f32
    %21 = vector.broadcast %cst_5 : f32 to vector<16x32xf32>
    %22 = arith.select %20, %3, %21 : vector<16x32xi1>, vector<16x32xf32>
    %cst_6 = arith.constant dense<0xFF800000> : vector<16xf32>
    %23 = vector.multi_reduction <maximumf>, %22, %cst_6 [1] : vector<16x32xf32> to vector<16xf32>
    %24 = vector.shape_cast %23 : vector<16xf32> to vector<16x1xf32>
    %25 = arith.addf %5, %6 : vector<16x1xf32>
    %26 = arith.mulf %25, %17 : vector<16x1xf32>
    %27 = arith.mulf %5, %24 : vector<16x1xf32>
    %28 = arith.subf %26, %27 : vector<16x1xf32>
    %29 = arith.mulf %6, %10 : vector<16x1xf32>
    %30 = arith.subf %28, %29 : vector<16x1xf32>
    %c16_i32 = arith.constant 16 : i32
    %31 = arith.muli %arg0, %c16_i32 : i32
    %32 = tpu.iota {dimensions = array<i32: 0>} : vector<16x1xi32>
    %33 = vector.broadcast %31 : i32 to vector<16x1xi32>
    %34 = arith.addi %33, %32 : vector<16x1xi32>
    %c40_i32 = arith.constant 40 : i32
    %35 = vector.broadcast %c40_i32 : i32 to vector<16x1xi32>
    %36 = arith.cmpi slt, %34, %35 : vector<16x1xi32>
    %cst_7 = arith.constant 0.000000e+00 : f32
    %37 = vector.broadcast %cst_7 : f32 to vector<16x1xf32>
    %38 = arith.select %36, %30, %37 : vector<16x1xi1>, vector<16x1xf32>
    %c0_8 = arith.constant 0 : index
    %c0_9 = arith.constant 0 : index
    %39 = vector.load %arg3[%c0_8, %c0_9] : memref<1x1xf32, #tpu.memory_space<vmem>>, vector<1x1xf32>
    %40 = vector.shape_cast %38 : vector<16x1xf32> to vector<1x16x1xf32>
    %cst_10 = arith.constant dense<0.000000e+00> : vector<1xf32>
    %41 = vector.multi_reduction <add>, %40, %cst_10 [1, 2] : vector<1x16x1xf32> to vector<1xf32>
    %42 = vector.shape_cast %41 : vector<1xf32> to vector<1x1x1xf32>
    %43 = vector.extract %42[0, 0, 0] : f32 from vector<1x1x1xf32>
    %44 = vector.broadcast %43 : f32 to vector<1x1xf32>
    %45 = arith.addf %39, %44 : vector<1x1xf32>
    %c0_11 = arith.constant 0 : index
    %c0_12 = arith.constant 0 : index
    %46 = vector.load %arg3[%c0_11, %c0_12] : memref<1x1xf32, #tpu.memory_space<vmem>>, vector<1x1xf32>
    tpu.vector_store %arg3[%c0_11, %c0_12], %45 {strides = array<i32>} : memref<1x1xf32, #tpu.memory_space<vmem>>, vector<1x1xf32>,
    return
  }
  func.func @transform_0(%arg0: i32) -> (i32, i32) {
    %c0_i32 = arith.constant 0 : i32
    %c0_i32_0 = arith.constant 0 : i32
    return %arg0, %c0_i32 : i32, i32
  }
  func.func @transform_1(%arg0: i32) -> (i32, i32) {
    %c0_i32 = arith.constant 0 : i32
    %c0_i32_0 = arith.constant 0 : i32
    return %arg0, %c0_i32 : i32, i32
  }
  func.func @transform_2(%arg0: i32) -> (i32, i32) {
    %c0_i32 = arith.constant 0 : i32
    %c0_i32_0 = arith.constant 0 : i32
    %c0_i32_1 = arith.constant 0 : i32
    return %c0_i32, %c0_i32_0 : i32, i32
  }
}

</mosaic_0001>

<llo_original>
// kernel: tpu_custom_call.1
$region0: #{tpu_custom_call.1}
  #allocation0 [shape = 'u32[]', space=smem, size = 0x4, offset = 0x4, fixed_abs, tag = 'smem constant byte address 0x4 - core index']
  #allocation1 [shape = 'u32[144,128]{1,0:T(1,128)}', space=vmem, size = 0x12000, scoped, tag = 'internal scratch']
  %s0 = inlined_call_operand.vmem [shape: f32[40,32], index: 0, kind: input, shape index: {}]
  %s1 = inlined_call_operand.vmem [shape: f32[40,3], index: 1, kind: input, shape index: {}]
  %s2 = inlined_call_operand.hbm [shape: f32[1,1], index: 2, kind: output, shape index: {}]
  %s3 = sld [smem:[#allocation0]]
  $region45: #{tpu_custom_call.1} parent=0
    _
  %s5 = ssub.s32 1, %s3
  %s6 = scalar_select 0, %s5, %s3
  $region1: #{tpu_custom_call.1} parent=0
    #allocation2 [shape = 'u8[512]{0}', space=vmem, size = 0x400, scoped, tag = 'output window, operand 0, single buffered']
    #allocation3 [shape = 's32[2]{0}', space=sflag, size = 0x8, scoped, tag = 'scoped memory for tpu_custom_call.1']
    %7 = vsyncpa [#allocation3], 0
    loop: start=0, step=1, limit=5
    $region2: #{tpu_custom_call.1} parent=1 // loop_pre_header
      _
    $region3: #{tpu_custom_call.1} parent=1 // loop_header
      %s9 = sphi 0, %s13
      %p10 = scmp.ge.s32.totalorder %s9, 5
      %s19 = sphi 0, %s21
      %s22 = sphi 0, %s19
      %s23 = sphi 0, %s22
      %s39 = sphi 0, %s23
      %s45 = sphi 0, %s47
      %s48 = sphi 0, %s45
      %s49 = sphi 0, %s48
      %s65 = sphi 0, %s49
      %s69 = sphi 0, %s69
      %s71 = sphi 0, %s69
      %s72 = sphi 0, %s71
      %s86 = sphi 0, %s72
    $region4: #{tpu_custom_call.1} parent=1 // loop_header_branch
      %12 = sbr.rel (%p10) target = $region8
    $region5: #{tpu_custom_call.1} parent=1 // loop_body
      %s14 = ssub.s32 %s9, 1
      %s15 = ssub.s32 %s9, 2
      %s16 = sadd.s32 %s9, 1
      %s17 = ssub.s32 %s9, %s16
      %p18 = scmp.eq.s32.totalorder %s17, 0
      %s20 = sadd.s32 %s19, 1
      %s21 = scalar_select %p18, %s19, %s20
      %p24 = pneg %p18
      %p25 = scmp.eq.s32.totalorder %s9, 2
      %p26 = por %p24, %p25
      %p27 = scmp.ne.s32.totalorder %s19, %s22
      %p28 = scmp.eq.s32.totalorder %s9, 0
      %p29 = por %p27, %p28
      %p30 = scmp.ne.s32.totalorder %s19, %s22
      %p31 = scmp.eq.s32.totalorder %s14, 2
      %p32 = por %p30, %p31
      %p33 = scmp.ne.s32.totalorder %s22, %s23
      %p34 = scmp.eq.s32.totalorder %s14, 0
      %p35 = por %p33, %p34
      %p36 = scmp.ne.s32.totalorder %s22, %s23
      %p37 = scmp.eq.s32.totalorder %s15, 2
      %p38 = por %p36, %p37
      %p40 = scmp.ne.s32.totalorder %s23, %s39
      %p41 = scmp.eq.s32.totalorder %s15, 0
      %p42 = por %p40, %p41
      %s43 = ssub.s32 %s9, %s16
      %p44 = scmp.eq.s32.totalorder %s43, 0
      %s46 = sadd.s32 %s45, 1
      %s47 = scalar_select %p44, %s45, %s46
      %p50 = pneg %p44
      %p51 = scmp.eq.s32.totalorder %s9, 2
      %p52 = por %p50, %p51
      %p53 = scmp.ne.s32.totalorder %s45, %s48
      %p54 = scmp.eq.s32.totalorder %s9, 0
      %p55 = por %p53, %p54
      %p56 = scmp.ne.s32.totalorder %s45, %s48
      %p57 = scmp.eq.s32.totalorder %s14, 2
      %p58 = por %p56, %p57
      %p59 = scmp.ne.s32.totalorder %s48, %s49
      %p60 = scmp.eq.s32.totalorder %s14, 0
      %p61 = por %p59, %p60
      %p62 = scmp.ne.s32.totalorder %s48, %s49
      %p63 = scmp.eq.s32.totalorder %s15, 2
      %p64 = por %p62, %p63
      %p66 = scmp.ne.s32.totalorder %s49, %s65
      %p67 = scmp.eq.s32.totalorder %s15, 0
      %p68 = por %p66, %p67
      %s70 = sadd.s32 %s69, 1
      %p73 = scmp.eq.s32.totalorder %s9, 2
      %p74 = scmp.ne.s32.totalorder %s69, %s71
      %p75 = scmp.eq.s32.totalorder %s9, 0
      %p76 = por %p74, %p75
      %p77 = scmp.ne.s32.totalorder %s69, %s71
      %p78 = scmp.eq.s32.totalorder %s14, 2
      %p79 = por %p77, %p78
      %p80 = scmp.ne.s32.totalorder %s71, %s72
      %p81 = scmp.eq.s32.totalorder %s14, 0
      %p82 = por %p80, %p81
      %p83 = scmp.ne.s32.totalorder %s71, %s72
      %p84 = scmp.eq.s32.totalorder %s15, 2
      %p85 = por %p83, %p84
      %p87 = scmp.ne.s32.totalorder %s72, %s86
      %p88 = scmp.eq.s32.totalorder %s15, 0
      %p89 = por %p87, %p88
      %p90 = scmp.le.s32.totalorder 1, %s9
      %p91 = scmp.lt.s32.totalorder %s9, 4
      %p92 = pnand %p90, %p91
      %p93 = pneg %p92
      // Predicated region
      $region9: #{tpu_custom_call.1} parent=5 // pred_check
        _
      $region10: #{tpu_custom_call.1} parent=5 // pred_check_branch
        %95 = sbr.rel (%p92) target = $region12
      $region11: #{tpu_custom_call.1} parent=5 // pred_region
        %s96 = ssub.s32 %s9, 1
      $region12: #{tpu_custom_call.1} parent=5 // pred_fallthru
        _
      %p97 = scmp.lt.s32.totalorder %s9, 3
      // Predicated region
      $region13: #{tpu_custom_call.1} parent=5 // pred_check
        %p98 = pneg %p97
      $region14: #{tpu_custom_call.1} parent=5 // pred_check_branch
        %100 = sbr.rel (%p98) target = $region16
      $region15: #{tpu_custom_call.1} parent=5 // pred_region
        // Predicated region
        $region17: #{tpu_custom_call.1} parent=15 // pred_check
          %p101 = pneg %p29
        $region18: #{tpu_custom_call.1} parent=15 // pred_check_branch
          %103 = sbr.rel (%p101) target = $region20
        $region19: #{tpu_custom_call.1} parent=15 // pred_region
          %s104 = smul.u32 2, %s9
          %s105 = ssub.s32 5, %s104
          %p106 = scmp.lt.s32.totalorder %s105, 2
          %s107 = scalar_select %p106, %s105, 2
          %s108 = smul.u32 128, %s107
          %p109 = scmp.lt.s32.totalorder %s104, 4
          %s110 = scalar_select %p109, %s104, 4
          %s111 = smul.addr %s110, 8
          %s112 = scalar_lea.vmem %s0, %s111
          %s113 = smul.u32 2, %s9
          %s114 = ssub.s32 5, %s113
          %p115 = scmp.lt.s32.totalorder %s114, 2
          %s116 = scalar_select %p115, %s114, 2
          %s117 = smul.u32 128, %s116
        $region20: #{tpu_custom_call.1} parent=15 // pred_fallthru
          _
        // Predicated region
        $region21: #{tpu_custom_call.1} parent=15 // pred_check
          %p118 = pneg %p55
        $region22: #{tpu_custom_call.1} parent=15 // pred_check_branch
          %120 = sbr.rel (%p118) target = $region24
        $region23: #{tpu_custom_call.1} parent=15 // pred_region
          %s121 = smul.u32 2, %s9
          %s122 = ssub.s32 5, %s121
          %p123 = scmp.lt.s32.totalorder %s122, 2
          %s124 = scalar_select %p123, %s122, 2
          %s125 = smul.u32 128, %s124
          %p126 = scmp.lt.s32.totalorder %s121, 4
          %s127 = scalar_select %p126, %s121, 4
          %s128 = smul.addr %s127, 8
          %s129 = scalar_lea.vmem %s1, %s128
          %s130 = smul.u32 2, %s9
          %s131 = ssub.s32 5, %s130
          %p132 = scmp.lt.s32.totalorder %s131, 2
          %s133 = scalar_select %p132, %s131, 2
          %s134 = smul.u32 128, %s133
        $region24: #{tpu_custom_call.1} parent=15 // pred_fallthru
          _
      $region16: #{tpu_custom_call.1} parent=5 // pred_fallthru
        _
      %p135 = scmp.le.s32.totalorder 1, %s9
      %p136 = scmp.lt.s32.totalorder %s9, 4
      %p137 = pnand %p135, %p136
      %p138 = pneg %p137
      // Predicated region
      $region25: #{tpu_custom_call.1} parent=5 // pred_check
        _
      $region26: #{tpu_custom_call.1} parent=5 // pred_check_branch
        %140 = sbr.rel (%p137) target = $region28
      $region27: #{tpu_custom_call.1} parent=5 // pred_region
        %s141 = ssub.s32 %s9, 1
        %s142 = smul.u32 2, %s14
        %s143 = ssub.s32 5, %s142
        %p144 = scmp.lt.s32.totalorder %s143, 2
        %s145 = scalar_select %p144, %s143, 2
        %s146 = smul.u32 128, %s145
        %p147 = scmp.lt.s32.totalorder %s142, 4
        %s148 = scalar_select %p147, %s142, 4
        %s149 = smul.addr %s148, 8
        %s150 = scalar_lea.vmem %s0, %s149
        %p151 = pneg %p35
        %p152 = pneg %p32
        %s153 = smul.u32 2, %s14
        %s154 = ssub.s32 5, %s153
        %p155 = scmp.lt.s32.totalorder %s154, 2
        %s156 = scalar_select %p155, %s154, 2
        %s157 = smul.u32 128, %s156
        %p158 = scmp.lt.s32.totalorder %s153, 4
        %s159 = scalar_select %p158, %s153, 4
        %s160 = smul.addr %s159, 8
        %s161 = scalar_lea.vmem %s1, %s160
        %p162 = pneg %p61
        %p163 = pneg %p58
        %p164 = pneg %p82
        %p165 = pneg %p79
        %s166 = smul.u32 2, %s14
        %s167 = ssub.s32 5, %s166
        %p168 = scmp.lt.s32.totalorder %s167, 2
        %s169 = scalar_select %p168, %s167, 2
        %s170 = smul.u32 128, %s169
        %p171 = scmp.lt.s32.totalorder %s166, 4
        %s172 = scalar_select %p171, %s166, 4
        %s173 = smul.addr %s172, 8
        %s174 = scalar_lea.vmem %s0, %s173
        %s175 = smul.u32 2, %s14
        %s176 = ssub.s32 5, %s175
        %p177 = scmp.lt.s32.totalorder %s176, 2
        %s178 = scalar_select %p177, %s176, 2
        %s179 = smul.u32 128, %s178
        %s180 = smul.u32 2, %s14
        %s181 = ssub.s32 5, %s180
        %p182 = scmp.lt.s32.totalorder %s181, 2
        %s183 = scalar_select %p182, %s181, 2
        %s184 = smul.u32 128, %s183
        %p185 = scmp.lt.s32.totalorder %s180, 4
        %s186 = scalar_select %p185, %s180, 4
        %s187 = smul.addr %s186, 8
        %s188 = scalar_lea.vmem %s1, %s187
        %s189 = smul.u32 2, %s14
        %s190 = ssub.s32 5, %s189
        %p191 = scmp.lt.s32.totalorder %s190, 2
        %s192 = scalar_select %p191, %s190, 2
        %s193 = smul.u32 128, %s192
        %p194 = scmp.eq.s32.totalorder %s14, 0
        // Predicated region
        $region29: #{tpu_custom_call.1} parent=27 // pred_check
          %p195 = pneg %p194
        $region30: #{tpu_custom_call.1} parent=27 // pred_check_branch
          %197 = sbr.rel (%p195) target = $region32
        $region31: #{tpu_custom_call.1} parent=27 // pred_region
          %vm198 = vcmask 0
          %199 = vst.msk [vmem:[#allocation2] sm:$0x1] %vm198, 0.0
        $region32: #{tpu_custom_call.1} parent=27 // pred_fallthru
          _
        %v200 = vld [vmem:[%s174] sm:$0xff]
        %v201 = vld [vmem:[%s174 + $0x8] sm:$0xff]
        %v202 = vld [vmem:[%s188] sm:$0xff]
        %v203 = vld [vmem:[%s188 + $0x8] sm:$0xff]
        %v204 = vcvt.f32.s32.to.zero.pseudo %v202
        %v205 = vcvt.f32.s32.to.zero.pseudo %v203
        %vm206 = vcmask 261120
        %v207 = vsel %vm206, %v200, -inf
        %208 = vmax.xlane.f32.xlu0 %v207
        %v209 = vpop.xlane.xlu0 %208
        %v210 = vsel %vm206, %v201, -inf
        %211 = vmax.xlane.f32.xlu0 %v210
        %v212 = vpop.xlane.xlu0 %211
        %v213 = vsub.f32 %v200, %v209
        %v214 = vsub.f32 %v201, %v212
        %v215 = vmul.f32 %v213, 1.442695
        %v216 = vpow.pop %v215
        %v217 = vmul.f32 %v214, 1.442695
        %v218 = vpow.pop %v217
        %v219 = vsel %vm206, %v216, 0.0
        %220 = vadd.xlane.f32.xlu0 %v219
        %v221 = vpop.xlane.xlu0 %220
        %v222 = vsel %vm206, %v218, 0.0
        %223 = vadd.xlane.f32.xlu0 %v222
        %v224 = vpop.xlane.xlu0 %223
        %v225 = vlog2.pop %v221
        %v226 = vmul.f32 %v225, 0.6931472
        %v227 = vlog2.pop %v224
        %v228 = vmul.f32 %v227, 0.6931472
        %v229 = vadd.f32 %v209, %v226
        %v230 = vadd.f32 %v212, %v228
        %v231 = vlaneseq
        %v232 = vand.u32 %v231, 127
        %233 = vset.pattern.permute.xlu0 2
        %234 = vperm.xlu0 %233, %v204
        %v235 = vpop.permute.xlu0 %234
        %236 = vset.pattern.permute.xlu0 2
        %237 = vperm.xlu0 %236, %v205
        %v238 = vpop.permute.xlu0 %237
        %vm239 = vcmp.eq.s32.totalorder %v232, %v235
        %vm240 = vcmp.eq.s32.totalorder %v232, %v238
        %v241 = vsel %vm239, %v200, -inf
        %v242 = vsel %vm240, %v201, -inf
        %v243 = vsel %vm206, %v241, -inf
        %244 = vmax.xlane.f32.xlu0 %v243
        %v245 = vpop.xlane.xlu0 %244
        %v246 = vsel %vm206, %v242, -inf
        %247 = vmax.xlane.f32.xlu0 %v246
        %v248 = vpop.xlane.xlu0 %247
        %251 = vrot.lane.b32.xlu0 %v202, 127
        %v252 = vpop.permute.xlu0 %251
        %253 = vrot.lane.b32.xlu0 %v203, 127
        %v254 = vpop.permute.xlu0 %253
        %v257 = vadd.f32 %v202, %v252
        %v258 = vadd.f32 %v203, %v254
        %v259 = vmul.f32 %v257, %v229
        %v260 = vmul.f32 %v258, %v230
        %v261 = vmul.f32 %v202, %v245
        %v262 = vmul.f32 %v203, %v248
        %v263 = vsub.f32 %v259, %v261
        %v264 = vsub.f32 %v260, %v262
        %v265 = vmul.f32 %v202, %v209
        %v266 = vmul.f32 %v203, %v212
        %269 = vrot.lane.b32.xlu0 %v265, 127
        %v270 = vpop.permute.xlu0 %269
        %271 = vrot.lane.b32.xlu0 %v266, 127
        %v272 = vpop.permute.xlu0 %271
        %v275 = vsub.f32 %v263, %v270
        %v276 = vsub.f32 %v264, %v272
        %s277 = smul.u32 %s14, 16
        %v278 = vlaneseq
        %v279 = vshrl.u32 %v278, 7
        %v280 = vadd.s32 %v279, 8
        %v281 = vstv %s277
        %v282 = vadd.s32 %v281, %v279
        %v283 = vadd.s32 %v281, %v280
        %vm284 = vcmp.lt.s32.totalorder %v282, 40
        %vm285 = vcmp.lt.s32.totalorder %v283, 40
        %v286 = vsel %vm284, %v275, 0.0
        %v287 = vsel %vm285, %v276, 0.0
        %v288 = vld [vmem:[#allocation2] sm:$0x1]
        %vm289 = vcmask 7168
        %v290 = vsel %vm289, %v286, 0.0
        %v291 = vsel %vm289, %v287, 0.0
        %v292 = vadd.f32 %v290, %v291
        %293 = vadd.xlane.f32.xlu0 %v292
        %v294 = vpop.xlane.xlu0 %293
        %v295 = vrot.slane %v294, 4
        %v296 = vadd.f32 %v294, %v295
        %v297 = vrot.slane %v296, 2
        %v298 = vadd.f32 %v296, %v297
        %v299 = vrot.slane %v298, 1
        %v300 = vadd.f32 %v298, %v299
        %s301 = vtos %v300
        %v302 = vstv %s301
        %v303 = vadd.f32 %v288, %v302
        %vm304 = vcmask 0
        %305 = vst.msk [vmem:[#allocation2] sm:$0x1] %vm304, %v303
        // Predicated region
        $region33: #{tpu_custom_call.1} parent=27 // pred_check
          %p306 = pneg %p79
        $region34: #{tpu_custom_call.1} parent=27 // pred_check_branch
          %308 = sbr.rel (%p306) target = $region36
        $region35: #{tpu_custom_call.1} parent=27 // pred_region
          %s310 = ssub.s32 16, 16
          %311 = vsyncadd [#allocation3], %s310
          %s313 = sshll.u32 [#allocation2], 4
          %s314 = int_to_ptr.vmem [resolvable:$true] %s313
          %316 = dma.vmem_to_hbm [thread:$0]  %s314, 16, %s2, [#allocation3]
        $region36: #{tpu_custom_call.1} parent=27 // pred_fallthru
          _
        // Predicated region
        $region37: #{tpu_custom_call.1} parent=27 // pred_check
          %p317 = pneg %p79
        $region38: #{tpu_custom_call.1} parent=27 // pred_check_branch
          %319 = sbr.rel (%p317) target = $region40
        $region39: #{tpu_custom_call.1} parent=27 // pred_region
          %320 = dma.done [#allocation3], 16
        $region40: #{tpu_custom_call.1} parent=27 // pred_fallthru
          _
      $region28: #{tpu_custom_call.1} parent=5 // pred_fallthru
        _
      %p321 = scmp.le.s32.totalorder 2, %s9
      // Predicated region
      $region41: #{tpu_custom_call.1} parent=5 // pred_check
        %p322 = pneg %p321
      $region42: #{tpu_custom_call.1} parent=5 // pred_check_branch
        %324 = sbr.rel (%p322) target = $region44
      $region43: #{tpu_custom_call.1} parent=5 // pred_region
        %s325 = ssub.s32 %s9, 2
      $region44: #{tpu_custom_call.1} parent=5 // pred_fallthru
        _
    $region6: #{tpu_custom_call.1} parent=1 // loop_footer
      %s13 = sadd.s32 1, %s9
    $region7: #{tpu_custom_call.1} parent=1 // loop_footer_branch
      %8 = sbr.rel target = $region3
    $region8: #{tpu_custom_call.1} parent=1 // loop_exit
      _
    %326 = vsyncpa [#allocation3], 1
    %s327 = scalar_lea.sflag [#allocation3], 1
    %328 = vsyncpa %s327, 1

</llo_original>
